<compile_context>
chip_gen: v7x
topology: tpu7x:2x2x1
jax: 0.10.0
libtpu: 0.0.40
codegen_flags: <defaults>
</compile_context>

<pallas_src>
import math
from functools import partial

import jax
import jax.numpy as jnp
from jax import lax
from jax.experimental import pallas as pl
from jax.experimental.pallas import tpu as pltpu


def _pick_vmem_limit_bytes():
    """Per-generation VMEM limit: ~3/4 of physical, capped at 100 MiB.

    v7x (64 MiB physical)  -> 48 MiB (headroom for compiler scratch)
    v5e/v6e (128 MiB)      -> 96 MiB (allows larger tiles / fewer grid steps)
    """
    cap = None
    try:
        cap = pltpu.get_tpu_info().vmem_capacity_bytes
    except Exception:
        cap = None
    if not cap:
        cap = 128 * 1024 * 1024
    return int(min(cap * 3 // 4, 100 * 1024 * 1024))


# --------------------------- Pass 1: QKV projection ---------------------------

def _qkv_kernel(x_ref, wqkv_ref, bqkv_ref, q_ref, k_ref, v_ref, *,
                n_embed: int, scale: float):
    C = n_embed
    xb = x_ref[0]                                            # (tq, C) bf16
    # Lane-dense N = 3C matmul with f32 accumulation on the MXU.
    qkv = jnp.dot(xb, wqkv_ref[...], preferred_element_type=jnp.float32)
    qkv = qkv + bqkv_ref[...]                                # bias add in f32
    # Fold 1/sqrt(hd) into q (O(T*C) multiplies, not O(T^2) per head); store
    # bf16 so the attention kernel DMAs half the bytes and feeds the MXU
    # directly.
    q_ref[0] = (qkv[:, :C] * scale).astype(jnp.bfloat16)
    k_ref[0] = qkv[:, C:2 * C].astype(jnp.bfloat16)
    v_ref[0] = qkv[:, 2 * C:].astype(jnp.bfloat16)


# ----------------- Pass 2: flash attention + fused projection -----------------

def _flash_attn_kernel(q_ref, k_ref, v_ref, wproj_ref, bproj_ref, o_ref, *,
                       n_head: int, head_dim: int, tq: int, tk: int):
    qi = pl.program_id(1)
    hd = head_dim
    q = q_ref[0]                         # (tq, C) bf16, pre-scaled by 1/sqrt(hd)

    # Triangular mask is only ever applied to the single diagonal KV tile; all
    # other visited tiles are fully below the diagonal (no mask / select work),
    # and tiles strictly above the diagonal are skipped entirely.
    row = lax.broadcasted_iota(jnp.int32, (tq, tk), 0)
    col = lax.broadcasted_iota(jnp.int32, (tq, tk), 1)
    diag_mask = col <= row
    neg_big = jnp.float32(-1e30)

    def head_output(h):
        """Online-softmax attention output for one head: (tq, hd) bf16."""
        qh = q[:, h * hd:(h + 1) * hd]                       # (tq, hd) bf16

        def load_kv(j):
            start = pl.multiple_of(j * tk, tk)
            kj = k_ref[0, pl.ds(start, tk), h * hd:(h + 1) * hd]   # (tk, hd) bf16
            vj = v_ref[0, pl.ds(start, tk), h * hd:(h + 1) * hd]   # (tk, hd) bf16
            return kj, vj

        def step(kj, vj, carry, mask):
            m_prev, l_prev, acc_prev = carry
            # Contract the head dim of q and k directly: no k transpose.
            s = lax.dot_general(qh, kj, (((1,), (1,)), ((), ())),
                                preferred_element_type=jnp.float32)  # (tq, tk)
            if mask is not None:
                s = jnp.where(mask, s, neg_big)
            m_new = jnp.maximum(m_prev, jnp.max(s, axis=-1, keepdims=True))
            alpha = jnp.exp(m_prev - m_new)
            p = jnp.exp(s - m_new)                                    # unnormalized
            l_new = alpha * l_prev + jnp.sum(p, axis=-1, keepdims=True)
            acc_new = alpha * acc_prev + jnp.dot(
                p.astype(jnp.bfloat16), vj, preferred_element_type=jnp.float32)
            return m_new, l_new, acc_new

        init = (jnp.full((tq, 1), neg_big, jnp.float32),
                jnp.zeros((tq, 1), jnp.float32),
                jnp.zeros((tq, hd), jnp.float32))

        # KV tiles strictly below the diagonal tile: unmasked, count = qi.
        def body(j, carry):
            kj, vj = load_kv(j)
            return step(kj, vj, carry, None)

        m, l, acc = lax.fori_loop(0, qi, body, init)

        # Diagonal tile: the only one paying for mask + masked exps.
        kj, vj = load_kv(qi)
        m, l, acc = step(kj, vj, (m, l, acc), diag_mask)

        # Deferred normalization: one (tq, hd) scale via the EUP reciprocal
        # instead of an O(tq * T) divide.  The diagonal is always visible, so
        # l > 0 and the approximate reciprocal is safe for this forward pass.
        o_h = acc * pl.reciprocal(l, approx=True)
        return o_h.astype(jnp.bfloat16)

    # Head-merge fused with the output projection, two heads at a time:
    #   y @ Wp == sum_g y_g @ Wp[g_rows, :]
    # Pairing gives K = 2*hd (=128 for GPT-2) per MXU matmul and halves the
    # number of (tq, C) f32 accumulator passes.
    acc_out = None
    h = 0
    while h < n_head:
        if h + 1 < n_head:
            o_grp = jnp.concatenate([head_output(h), head_output(h + 1)], axis=-1)
            rows = 2 * hd
        else:                                   # odd head-count fallback
            o_grp = head_output(h)
            rows = hd
        wp = wproj_ref[h * hd:h * hd + rows, :]              # (rows, C) bf16
        contrib = jnp.dot(o_grp, wp, preferred_element_type=jnp.float32)
        acc_out = contrib if acc_out is None else acc_out + contrib
        h += rows // hd

    # Single write of the projected tile (no zero-fill, no extra scratch copy).
    o_ref[0] = (acc_out + bproj_ref[...]).astype(o_ref.dtype)


# --------------------------------- Wrappers -----------------------------------

def prepare_attention_params(w_qkv, b_qkv, w_proj, b_proj):
    """Cast weights to bf16 ONCE at parameter-load time (not per forward)."""
    return (jnp.asarray(w_qkv, jnp.bfloat16), jnp.asarray(b_qkv, jnp.float32),
            jnp.asarray(w_proj, jnp.bfloat16), jnp.asarray(b_proj, jnp.float32))


def causal_self_attention(x, params, *, n_head, q_tile=128):
    """x: (B, T, C) f32; params = prepare_attention_params(w_qkv, b_qkv, w_proj, b_proj).

    Weights are (in_features, out_features) so the kernels compute x @ W + b,
    matching the PyTorch nn.Linear forward.
    """
    w_qkv, b_qkv, w_proj, b_proj = params
    B, T, C = x.shape
    assert C % n_head == 0
    hd = C // n_head
    tq = min(q_tile, T)
    assert T % tq == 0, "sequence length must be a multiple of the query tile"
    n_qt = T // tq
    vmem_limit = _pick_vmem_limit_bytes()

    # x is consumed in bf16 by the MXU anyway; cast in the wrapper so the
    # kernel DMAs half the input bytes per grid step.
    x_bf16 = x.astype(jnp.bfloat16)

    row_spec = pl.BlockSpec((1, tq, C), lambda b, i: (b, i, 0))

    # ---- Pass 1: fused QKV projection -> bf16 q (pre-scaled), k, v ----
    qkv_kernel = partial(_qkv_kernel, n_embed=C, scale=1.0 / math.sqrt(float(hd)))
    qkv_shape = jax.ShapeDtypeStruct((B, T, C), jnp.bfloat16)
    q, k, v = pl.pallas_call(
        qkv_kernel,
        out_shape=(qkv_shape, qkv_shape, qkv_shape),
        grid_spec=pltpu.PrefetchScalarGridSpec(
            num_scalar_prefetch=0,
            grid=(B, n_qt),
            in_specs=[
                row_spec,                                        # x tile (bf16)
                pl.BlockSpec((C, 3 * C), lambda b, i: (0, 0)),   # w_qkv (bf16)
                pl.BlockSpec((1, 3 * C), lambda b, i: (0, 0)),   # b_qkv (f32)
            ],
            out_specs=[row_spec, row_spec, row_spec],
        ),
        compiler_params=pltpu.CompilerParams(
            dimension_semantics=("parallel", "parallel"),
            vmem_limit_bytes=vmem_limit),
    )(x_bf16, w_qkv, b_qkv)

    # ---- Pass 2: flash attention + fused head-merge / output projection ----
    attn_kernel = partial(_flash_attn_kernel, n_head=n_head, head_dim=hd,
                          tq=tq, tk=tq)
    out = pl.pallas_call(
        attn_kernel,
        out_shape=jax.ShapeDtypeStruct((B, T, C), x.dtype),
        grid_spec=pltpu.PrefetchScalarGridSpec(
            num_scalar_prefetch=0,
            grid=(B, n_qt),
            in_specs=[
                pl.BlockSpec((1, tq, C), lambda b, i: (b, i, 0)),  # q tile
                pl.BlockSpec((1, T, C), lambda b, i: (b, 0, 0)),   # k (full seq)
                pl.BlockSpec((1, T, C), lambda b, i: (b, 0, 0)),   # v (full seq)
                pl.BlockSpec((C, C), lambda b, i: (0, 0)),         # w_proj (bf16)
                pl.BlockSpec((1, C), lambda b, i: (0, 0)),         # b_proj (f32)
            ],
            out_specs=pl.BlockSpec((1, tq, C), lambda b, i: (b, i, 0)),
        ),
        compiler_params=pltpu.CompilerParams(
            # Both axes parallel: the q-tile axis keeps both v7x TensorCores
            # busy even at batch size 1.
            dimension_semantics=("parallel", "parallel"),
            vmem_limit_bytes=vmem_limit),
    )(q, k, v, w_proj, b_proj)
    return out


def reference(x, w_qkv, b_qkv, w_proj, b_proj, n_head):
    """Pure-JAX f32 reference mirroring the PyTorch forward."""
    B, T, C = x.shape
    hd = C // n_head
    qkv = x @ w_qkv + b_qkv[0]                          # (B, T, 3C)
    q, k, v = jnp.split(qkv, 3, axis=-1)

    def heads(t):                                       # (B, T, C) -> (B, H, T, hd)
        return t.reshape(B, T, n_head, hd).transpose(0, 2, 1, 3)

    q, k, v = heads(q), heads(k), heads(v)
    s = jnp.einsum('bhtd,bhsd->bhts', q, k) / math.sqrt(hd)
    mask = jnp.tril(jnp.ones((T, T), dtype=bool))
    s = jnp.where(mask, s, -jnp.inf)
    p = jax.nn.softmax(s, axis=-1)
    y = jnp.einsum('bhts,bhsd->bhtd', p, v)
    y = y.transpose(0, 2, 1, 3).reshape(B, T, C)
    return y @ w_proj + b_proj[0]


if __name__ == "__main__":
    # Small config consistent with the module: n_embed % n_head == 0, T <= block_size.
    B, T, C, H = 2, 8, 32, 4

    key = jax.random.PRNGKey(0)
    kx, k1, k2, k3, k4 = jax.random.split(key, 5)

    x = jax.random.normal(kx, (B, T, C), dtype=jnp.float32)
    # Parameters stored as (in, out) so the kernel does x @ W + b.
    w_qkv = 0.02 * jax.random.normal(k1, (C, 3 * C), dtype=jnp.float32)
    b_qkv = 0.02 * jax.random.normal(k2, (1, 3 * C), dtype=jnp.float32)
    w_proj = 0.02 * jax.random.normal(k3, (C, C), dtype=jnp.float32)
    b_proj = 0.02 * jax.random.normal(k4, (1, C), dtype=jnp.float32)

    params = prepare_attention_params(w_qkv, b_qkv, w_proj, b_proj)
    out = causal_self_attention(x, params, n_head=H)
    out = jax.block_until_ready(out)

    ref = reference(x, w_qkv, b_qkv, w_proj, b_proj, n_head=H)
    assert out.shape == (B, T, C)
    # bf16 MXU operands + approx reciprocal => loosened tolerance vs. f32 ref.
    err = jnp.max(jnp.abs(out - ref))
    assert jnp.allclose(out, ref, atol=5e-3, rtol=5e-2), f"max abs err {err}"

    print("KERNEL_OK")
</pallas_src>

<mosaic_0001>
module attributes {stable_mosaic.version = 11 : i64} {
  func.func @_qkv_kernel(%arg0: i32, %arg1: i32, %arg2: memref<1x8x32xbf16, #tpu.memory_space<vmem>>, %arg3: memref<32x96xbf16, #tpu.memory_space<vmem>>, %arg4: memref<1x96xf32, #tpu.memory_space<vmem>>, %arg5: memref<1x8x32xbf16, #tpu.memory_space<vmem>>, %arg6: memref<1x8x32xbf16, #tpu.memory_space<vmem>>, %arg7: memref<1x8x32xbf16, #tpu.memory_space<vmem>>) attributes {dimension_semantics = [#tpu.dimension_semantics<parallel>, #tpu.dimension_semantics<parallel>], iteration_bounds = array<i64: 2, 1>, scalar_prefetch = 0 : i64, scratch_operands = 0 : i64, tpu.core_type = #tpu.core_type<tc>, window_params = [{transform_indices = @transform_0, window_bounds = array<i64: 1, 8, 32>}, {pipeline_mode = #tpu.pipeline_mode<synchronous>, transform_indices = @transform_1, window_bounds = array<i64: 32, 96>}, {pipeline_mode = #tpu.pipeline_mode<synchronous>, transform_indices = @transform_2, window_bounds = array<i64: 1, 96>}, {transform_indices = @transform_3, window_bounds = array<i64: 1, 8, 32>}, {transform_indices = @transform_4, window_bounds = array<i64: 1, 8, 32>}, {transform_indices = @transform_5, window_bounds = array<i64: 1, 8, 32>}]} {
    %c0 = arith.constant 0 : index
    %c0_0 = arith.constant 0 : index
    %c0_1 = arith.constant 0 : index
    %0 = vector.load %arg2[%c0, %c0_0, %c0_1] : memref<1x8x32xbf16, #tpu.memory_space<vmem>>, vector<1x8x32xbf16>
    %1 = vector.shape_cast %0 : vector<1x8x32xbf16> to vector<8x32xbf16>
    %c0_2 = arith.constant 0 : index
    %c0_3 = arith.constant 0 : index
    %2 = vector.load %arg3[%c0_2, %c0_3] : memref<32x96xbf16, #tpu.memory_space<vmem>>, vector<32x96xbf16>
    %cst = arith.constant dense<0.000000e+00> : vector<8x96xf32>
    %3 = tpu.matmul %1, %2, %cst {dimension_numbers = #tpu.dot_dimension_numbers<[1], [0], [0], [1], [0, 0, 1, 1], [], []>} : vector<8x32xbf16>, vector<32x96xbf16>, vector<8x96xf32> -> vector<8x96xf32>
    %c0_4 = arith.constant 0 : index
    %c0_5 = arith.constant 0 : index
    %4 = vector.load %arg4[%c0_4, %c0_5] : memref<1x96xf32, #tpu.memory_space<vmem>>, vector<1x96xf32>
    %5 = vector.broadcast %4 : vector<1x96xf32> to vector<8x96xf32>
    %6 = arith.addf %3, %5 : vector<8x96xf32>
    %7 = vector.extract_strided_slice %6 {offsets = [0, 0], sizes = [8, 32], strides = [1, 1]} : vector<8x96xf32> to vector<8x32xf32>
    %cst_6 = arith.constant 0.353553385 : f32
    %8 = vector.broadcast %cst_6 : f32 to vector<8x32xf32>
    %9 = arith.mulf %7, %8 : vector<8x32xf32>
    %10 = arith.truncf %9 : vector<8x32xf32> to vector<8x32xbf16>
    %c0_7 = arith.constant 0 : index
    %c0_8 = arith.constant 0 : index
    %c0_9 = arith.constant 0 : index
    %11 = vector.load %arg5[%c0_7, %c0_8, %c0_9] : memref<1x8x32xbf16, #tpu.memory_space<vmem>>, vector<1x8x32xbf16>
    %12 = vector.shape_cast %11 : vector<1x8x32xbf16> to vector<8x32xbf16>
    %13 = vector.shape_cast %10 : vector<8x32xbf16> to vector<1x8x32xbf16>
    tpu.vector_store %arg5[%c0_7, %c0_8, %c0_9], %13 {strides = array<i32>} : memref<1x8x32xbf16, #tpu.memory_space<vmem>>, vector<1x8x32xbf16>,
    %14 = vector.extract_strided_slice %6 {offsets = [0, 32], sizes = [8, 32], strides = [1, 1]} : vector<8x96xf32> to vector<8x32xf32>
    %15 = arith.truncf %14 : vector<8x32xf32> to vector<8x32xbf16>
    %c0_10 = arith.constant 0 : index
    %c0_11 = arith.constant 0 : index
    %c0_12 = arith.constant 0 : index
    %16 = vector.load %arg6[%c0_10, %c0_11, %c0_12] : memref<1x8x32xbf16, #tpu.memory_space<vmem>>, vector<1x8x32xbf16>
    %17 = vector.shape_cast %16 : vector<1x8x32xbf16> to vector<8x32xbf16>
    %18 = vector.shape_cast %15 : vector<8x32xbf16> to vector<1x8x32xbf16>
    tpu.vector_store %arg6[%c0_10, %c0_11, %c0_12], %18 {strides = array<i32>} : memref<1x8x32xbf16, #tpu.memory_space<vmem>>, vector<1x8x32xbf16>,
    %19 = vector.extract_strided_slice %6 {offsets = [0, 64], sizes = [8, 32], strides = [1, 1]} : vector<8x96xf32> to vector<8x32xf32>
    %20 = arith.truncf %19 : vector<8x32xf32> to vector<8x32xbf16>
    %c0_13 = arith.constant 0 : index
    %c0_14 = arith.constant 0 : index
    %c0_15 = arith.constant 0 : index
    %21 = vector.load %arg7[%c0_13, %c0_14, %c0_15] : memref<1x8x32xbf16, #tpu.memory_space<vmem>>, vector<1x8x32xbf16>
    %22 = vector.shape_cast %21 : vector<1x8x32xbf16> to vector<8x32xbf16>
    %23 = vector.shape_cast %20 : vector<8x32xbf16> to vector<1x8x32xbf16>
    tpu.vector_store %arg7[%c0_13, %c0_14, %c0_15], %23 {strides = array<i32>} : memref<1x8x32xbf16, #tpu.memory_space<vmem>>, vector<1x8x32xbf16>,
    return
  }
  func.func @transform_0(%arg0: i32, %arg1: i32) -> (i32, i32, i32) {
    %c0_i32 = arith.constant 0 : i32
    %c0_i32_0 = arith.constant 0 : i32
    return %arg0, %arg1, %c0_i32 : i32, i32, i32
  }
  func.func @transform_1(%arg0: i32, %arg1: i32) -> (i32, i32) {
    %c0_i32 = arith.constant 0 : i32
    %c0_i32_0 = arith.constant 0 : i32
    %c0_i32_1 = arith.constant 0 : i32
    return %c0_i32, %c0_i32_0 : i32, i32
  }
  func.func @transform_2(%arg0: i32, %arg1: i32) -> (i32, i32) {
    %c0_i32 = arith.constant 0 : i32
    %c0_i32_0 = arith.constant 0 : i32
    %c0_i32_1 = arith.constant 0 : i32
    return %c0_i32, %c0_i32_0 : i32, i32
  }
  func.func @transform_3(%arg0: i32, %arg1: i32) -> (i32, i32, i32) {
    %c0_i32 = arith.constant 0 : i32
    %c0_i32_0 = arith.constant 0 : i32
    return %arg0, %arg1, %c0_i32 : i32, i32, i32
  }
  func.func @transform_4(%arg0: i32, %arg1: i32) -> (i32, i32, i32) {
    %c0_i32 = arith.constant 0 : i32
    %c0_i32_0 = arith.constant 0 : i32
    return %arg0, %arg1, %c0_i32 : i32, i32, i32
  }
  func.func @transform_5(%arg0: i32, %arg1: i32) -> (i32, i32, i32) {
    %c0_i32 = arith.constant 0 : i32
    %c0_i32_0 = arith.constant 0 : i32
    return %arg0, %arg1, %c0_i32 : i32, i32, i32
  }
}

</mosaic_0001>

<llo_original>
// kernel: tpu_custom_call.1
$region0: #{tpu_custom_call.1}
  #allocation0 [shape = 'u32[]', space=smem, size = 0x4, offset = 0x4, fixed_abs, tag = 'smem constant byte address 0x4 - core index']
  #allocation1 [shape = 'u32[144,128]{1,0:T(1,128)}', space=vmem, size = 0x12000, scoped, tag = 'internal scratch']
  %s0 = inlined_call_operand.hbm [shape: bf16[2,8,32], index: 0, kind: input, shape index: {}]
  %s1 = inlined_call_operand.hbm [shape: bf16[32,96], index: 1, kind: input, shape index: {}]
  %s2 = inlined_call_operand.hbm [shape: f32[1,96], index: 2, kind: input, shape index: {}]
  %s3 = inlined_call_operand.hbm [shape: bf16[2,8,32], index: 3, kind: output, shape index: {0}]
  %s4 = inlined_call_operand.hbm [shape: bf16[2,8,32], index: 4, kind: output, shape index: {1}]
  %s5 = inlined_call_operand.hbm [shape: bf16[2,8,32], index: 5, kind: output, shape index: {2}]
  %6 = xla_tuple %s3, %s4, %s5
  %s7 = sld [smem:[#allocation0]]
  $region73: #{tpu_custom_call.1} parent=0
    _
  %s9 = ssub.s32 1, %s7
  %s10 = scalar_select 0, %s9, %s7
  $region1: #{tpu_custom_call.1} parent=0
    #allocation2 [shape = 'u8[4096]{0}', space=vmem, size = 0x1000, scoped, tag = 'input window, operand 0']
    #allocation3 [shape = 's32[2]{0}', space=sflag, size = 0x8, scoped, tag = 'scoped memory for tpu_custom_call.1']
    #allocation4 [shape = 's32[2]{0}', space=sflag, size = 0x8, scoped, tag = 'scoped memory for tpu_custom_call.1']
    #allocation5 [shape = 'u8[8192]{0}', space=vmem, size = 0x2000, scoped, tag = 'input window, operand 1, single buffered']
    #allocation6 [shape = 's32[1]{0}', space=sflag, size = 0x4, scoped, tag = 'scoped memory for tpu_custom_call.1']
    #allocation7 [shape = 'u8[512]{0}', space=vmem, size = 0x400, scoped, tag = 'input window, operand 2, single buffered']
    #allocation8 [shape = 'u8[4096]{0}', space=vmem, size = 0x1000, scoped, tag = 'output window, operand 0']
    #allocation9 [shape = 'u8[4096]{0}', space=vmem, size = 0x1000, scoped, tag = 'output window, operand 1']
    #allocation10 [shape = 's32[2]{0}', space=sflag, size = 0x8, scoped, tag = 'scoped memory for tpu_custom_call.1']
    #allocation11 [shape = 'u8[4096]{0}', space=vmem, size = 0x1000, scoped, tag = 'output window, operand 2']
    %11 = vsyncpa [#allocation3], 0
    %s12 = scalar_lea.sflag [#allocation3], 1
    %13 = vsyncpa %s12, 0
    %14 = vsyncpa [#allocation6], 0
    %15 = vsyncpa [#allocation4], 0
    %s16 = scalar_lea.sflag [#allocation4], 1
    %17 = vsyncpa %s16, 0
    %18 = vsyncpa [#allocation10], 0
    %s19 = scalar_lea.sflag [#allocation10], 1
    %20 = vsyncpa %s19, 0
    loop: start=0, step=1, limit=4
    $region2: #{tpu_custom_call.1} parent=1 // loop_pre_header
      _
    $region3: #{tpu_custom_call.1} parent=1 // loop_header
      %s22 = sphi 0, %s26
      %p23 = scmp.ge.s32.totalorder %s22, 4
      %s29 = sphi 0, %s41
      %s30 = sphi 0, %s37
      %s31 = sphi 0, %s29
      %s32 = sphi 0, %s30
      %s33 = sphi 0, %s31
      %s34 = sphi 0, %s32
      %s46 = sphi 0, %s48
      %s49 = sphi 0, %s46
      %s50 = sphi 0, %s49
      %s66 = sphi 0, %s50
      %s70 = sphi 0, %s70
      %s72 = sphi 0, %s70
      %s73 = sphi 0, %s72
      %s87 = sphi 0, %s73
      %s91 = sphi 0, %s91
      %s93 = sphi 0, %s91
      %s94 = sphi 0, %s93
      %s108 = sphi 0, %s94
      %s116 = sphi 0, %s118
      %s119 = sphi 0, %s116
      %s120 = sphi 0, %s119
      %s136 = sphi 0, %s120
      %s144 = sphi 0, %s146
      %s147 = sphi 0, %s144
      %s148 = sphi 0, %s147
      %s164 = sphi 0, %s148
      %s172 = sphi 0, %s174
      %s175 = sphi 0, %s172
      %s176 = sphi 0, %s175
      %s192 = sphi 0, %s176
    $region4: #{tpu_custom_call.1} parent=1 // loop_header_branch
      %25 = sbr.rel (%p23) target = $region8
    $region5: #{tpu_custom_call.1} parent=1 // loop_body
      %s27 = ssub.s32 %s22, 1
      %s28 = ssub.s32 %s22, 2
      %s35 = sadd.s32 1, %s30
      %p36 = scmp.ge.s32.totalorder %s35, 1
      %s37 = scalar_select %p36, 0, %s35
      %s38 = sadd.s32 1, %s29
      %s39 = scalar_select %p36, %s38, %s29
      %p40 = scmp.ge.s32.totalorder %s39, 2
      %s41 = scalar_select %p40, 0, %s39
      %s42 = ssub.s32 %s29, %s41
      %s43 = ssub.s32 %s30, %s37
      %s44 = sor.u32 %s42, %s43
      %p45 = scmp.eq.s32.totalorder %s44, 0
      %s47 = sadd.s32 %s46, 1
      %s48 = scalar_select %p45, %s46, %s47
      %p51 = pneg %p45
      %p52 = scmp.eq.s32.totalorder %s22, 1
      %p53 = por %p51, %p52
      %p54 = scmp.ne.s32.totalorder %s46, %s49
      %p55 = scmp.eq.s32.totalorder %s22, 0
      %p56 = por %p54, %p55
      %p57 = scmp.ne.s32.totalorder %s46, %s49
      %p58 = scmp.eq.s32.totalorder %s27, 1
      %p59 = por %p57, %p58
      %p60 = scmp.ne.s32.totalorder %s49, %s50
      %p61 = scmp.eq.s32.totalorder %s27, 0
      %p62 = por %p60, %p61
      %p63 = scmp.ne.s32.totalorder %s49, %s50
      %p64 = scmp.eq.s32.totalorder %s28, 1
      %p65 = por %p63, %p64
      %p67 = scmp.ne.s32.totalorder %s50, %s66
      %p68 = scmp.eq.s32.totalorder %s28, 0
      %p69 = por %p67, %p68
      %s71 = sadd.s32 %s70, 1
      %p74 = scmp.eq.s32.totalorder %s22, 1
      %p75 = scmp.ne.s32.totalorder %s70, %s72
      %p76 = scmp.eq.s32.totalorder %s22, 0
      %p77 = por %p75, %p76
      %p78 = scmp.ne.s32.totalorder %s70, %s72
      %p79 = scmp.eq.s32.totalorder %s27, 1
      %p80 = por %p78, %p79
      %p81 = scmp.ne.s32.totalorder %s72, %s73
      %p82 = scmp.eq.s32.totalorder %s27, 0
      %p83 = por %p81, %p82
      %p84 = scmp.ne.s32.totalorder %s72, %s73
      %p85 = scmp.eq.s32.totalorder %s28, 1
      %p86 = por %p84, %p85
      %p88 = scmp.ne.s32.totalorder %s73, %s87
      %p89 = scmp.eq.s32.totalorder %s28, 0
      %p90 = por %p88, %p89
      %s92 = sadd.s32 %s91, 1
      %p95 = scmp.eq.s32.totalorder %s22, 1
      %p96 = scmp.ne.s32.totalorder %s91, %s93
      %p97 = scmp.eq.s32.totalorder %s22, 0
      %p98 = por %p96, %p97
      %p99 = scmp.ne.s32.totalorder %s91, %s93
      %p100 = scmp.eq.s32.totalorder %s27, 1
      %p101 = por %p99, %p100
      %p102 = scmp.ne.s32.totalorder %s93, %s94
      %p103 = scmp.eq.s32.totalorder %s27, 0
      %p104 = por %p102, %p103
      %p105 = scmp.ne.s32.totalorder %s93, %s94
      %p106 = scmp.eq.s32.totalorder %s28, 1
      %p107 = por %p105, %p106
      %p109 = scmp.ne.s32.totalorder %s94, %s108
      %p110 = scmp.eq.s32.totalorder %s28, 0
      %p111 = por %p109, %p110
      %s112 = ssub.s32 %s29, %s41
      %s113 = ssub.s32 %s30, %s37
      %s114 = sor.u32 %s112, %s113
      %p115 = scmp.eq.s32.totalorder %s114, 0
      %s117 = sadd.s32 %s116, 1
      %s118 = scalar_select %p115, %s116, %s117
      %p121 = pneg %p115
      %p122 = scmp.eq.s32.totalorder %s22, 1
      %p123 = por %p121, %p122
      %p124 = scmp.ne.s32.totalorder %s116, %s119
      %p125 = scmp.eq.s32.totalorder %s22, 0
      %p126 = por %p124, %p125
      %p127 = scmp.ne.s32.totalorder %s116, %s119
      %p128 = scmp.eq.s32.totalorder %s27, 1
      %p129 = por %p127, %p128
      %p130 = scmp.ne.s32.totalorder %s119, %s120
      %p131 = scmp.eq.s32.totalorder %s27, 0
      %p132 = por %p130, %p131
      %p133 = scmp.ne.s32.totalorder %s119, %s120
      %p134 = scmp.eq.s32.totalorder %s28, 1
      %p135 = por %p133, %p134
      %p137 = scmp.ne.s32.totalorder %s120, %s136
      %p138 = scmp.eq.s32.totalorder %s28, 0
      %p139 = por %p137, %p138
      %s140 = ssub.s32 %s29, %s41
      %s141 = ssub.s32 %s30, %s37
      %s142 = sor.u32 %s140, %s141
      %p143 = scmp.eq.s32.totalorder %s142, 0
      %s145 = sadd.s32 %s144, 1
      %s146 = scalar_select %p143, %s144, %s145
      %p149 = pneg %p143
      %p150 = scmp.eq.s32.totalorder %s22, 1
      %p151 = por %p149, %p150
      %p152 = scmp.ne.s32.totalorder %s144, %s147
      %p153 = scmp.eq.s32.totalorder %s22, 0
      %p154 = por %p152, %p153
      %p155 = scmp.ne.s32.totalorder %s144, %s147
      %p156 = scmp.eq.s32.totalorder %s27, 1
      %p157 = por %p155, %p156
      %p158 = scmp.ne.s32.totalorder %s147, %s148
      %p159 = scmp.eq.s32.totalorder %s27, 0
      %p160 = por %p158, %p159
      %p161 = scmp.ne.s32.totalorder %s147, %s148
      %p162 = scmp.eq.s32.totalorder %s28, 1
      %p163 = por %p161, %p162
      %p165 = scmp.ne.s32.totalorder %s148, %s164
      %p166 = scmp.eq.s32.totalorder %s28, 0
      %p167 = por %p165, %p166
      %s168 = ssub.s32 %s29, %s41
      %s169 = ssub.s32 %s30, %s37
      %s170 = sor.u32 %s168, %s169
      %p171 = scmp.eq.s32.totalorder %s170, 0
      %s173 = sadd.s32 %s172, 1
      %s174 = scalar_select %p171, %s172, %s173
      %p177 = pneg %p171
      %p178 = scmp.eq.s32.totalorder %s22, 1
      %p179 = por %p177, %p178
      %p180 = scmp.ne.s32.totalorder %s172, %s175
      %p181 = scmp.eq.s32.totalorder %s22, 0
      %p182 = por %p180, %p181
      %p183 = scmp.ne.s32.totalorder %s172, %s175
      %p184 = scmp.eq.s32.totalorder %s27, 1
      %p185 = por %p183, %p184
      %p186 = scmp.ne.s32.totalorder %s175, %s176
      %p187 = scmp.eq.s32.totalorder %s27, 0
      %p188 = por %p186, %p187
      %p189 = scmp.ne.s32.totalorder %s175, %s176
      %p190 = scmp.eq.s32.totalorder %s28, 1
      %p191 = por %p189, %p190
      %p193 = scmp.ne.s32.totalorder %s176, %s192
      %p194 = scmp.eq.s32.totalorder %s28, 0
      %p195 = por %p193, %p194
      %p196 = scmp.le.s32.totalorder 1, %s22
      %p197 = scmp.lt.s32.totalorder %s22, 3
      %p198 = pnand %p196, %p197
      %p199 = pneg %p198
      // Predicated region
      $region9: #{tpu_custom_call.1} parent=5 // pred_check
        _
      $region10: #{tpu_custom_call.1} parent=5 // pred_check_branch
        %201 = sbr.rel (%p198) target = $region12
      $region11: #{tpu_custom_call.1} parent=5 // pred_region
        %s202 = ssub.s32 %s22, 1
        // Predicated region
        $region13: #{tpu_custom_call.1} parent=11 // pred_check
          %p203 = pneg %p83
        $region14: #{tpu_custom_call.1} parent=11 // pred_check_branch
          %205 = sbr.rel (%p203) target = $region16
        $region15: #{tpu_custom_call.1} parent=11 // pred_region
          %s207 = ssub.s32 256, 256
          %208 = vsyncadd [#allocation6], %s207
          %s209 = sshll.u32 [#allocation5], 4
          %s210 = int_to_ptr.vmem [resolvable:$true] %s209
          %215 = dma.hbm_to_vmem [thread:$0]  %s1, 256, %s210, [#allocation6], 64, 64, 4
        $region16: #{tpu_custom_call.1} parent=11 // pred_fallthru
          _
        // Predicated region
        $region17: #{tpu_custom_call.1} parent=11 // pred_check
          %p216 = pneg %p104
        $region18: #{tpu_custom_call.1} parent=11 // pred_check_branch
          %218 = sbr.rel (%p216) target = $region20
        $region19: #{tpu_custom_call.1} parent=11 // pred_region
          %s220 = ssub.s32 16, 16
          %221 = vsyncadd [#allocation6], %s220
          %s223 = sshll.u32 [#allocation7], 4
          %s224 = int_to_ptr.vmem [resolvable:$true] %s223
          %226 = dma.hbm_to_vmem [thread:$0]  %s2, 16, %s224, [#allocation6]
        $region20: #{tpu_custom_call.1} parent=11 // pred_fallthru
          _
      $region12: #{tpu_custom_call.1} parent=5 // pred_fallthru
        _
      %p227 = scmp.lt.s32.totalorder %s22, 2
      // Predicated region
      $region21: #{tpu_custom_call.1} parent=5 // pred_check
        %p228 = pneg %p227
      $region22: #{tpu_custom_call.1} parent=5 // pred_check_branch
        %230 = sbr.rel (%p228) target = $region24
      $region23: #{tpu_custom_call.1} parent=5 // pred_region
        // Predicated region
        $region25: #{tpu_custom_call.1} parent=23 // pred_check
          %p231 = pneg %p56
        $region26: #{tpu_custom_call.1} parent=23 // pred_check_branch
          %233 = sbr.rel (%p231) target = $region28
        $region27: #{tpu_custom_call.1} parent=23 // pred_region
          %s234 = sand.u32 %s46, 1
          %s235 = scalar_lea.sflag [#allocation3], %s234
          %s236 = sand.u32 %s46, 1
          %s237 = smul.addr %s236, 4
          %s238 = scalar_lea.vmem [#allocation2], %s237
          %s240 = ssub.s32 64, 64
          %241 = vsyncadd %s235, %s240
          %s242 = sadd.s32 %s30, %s29
          %s243 = smul.addr %s242, 64
          %s244 = scalar_lea.hbm %s0, %s243
          %s246 = sshll.u32 %s238, 4
          %s247 = int_to_ptr.vmem [resolvable:$true] %s246
          %249 = dma.hbm_to_vmem [thread:$0]  %s244, 64, %s247, %s235
        $region28: #{tpu_custom_call.1} parent=23 // pred_fallthru
          _
      $region24: #{tpu_custom_call.1} parent=5 // pred_fallthru
        _
      %p250 = scmp.le.s32.totalorder 1, %s22
      %p251 = scmp.lt.s32.totalorder %s22, 3
      %p252 = pnand %p250, %p251
      %p253 = pneg %p252
      // Predicated region
      $region29: #{tpu_custom_call.1} parent=5 // pred_check
        _
      $region30: #{tpu_custom_call.1} parent=5 // pred_check_branch
        %255 = sbr.rel (%p252) target = $region32
      $region31: #{tpu_custom_call.1} parent=5 // pred_region
        %s256 = ssub.s32 %s22, 1
        %s257 = sand.u32 %s49, 1
        %s258 = scalar_lea.sflag [#allocation3], %s257
        %s259 = sand.u32 %s49, 1
        %s260 = smul.addr %s259, 4
        %s261 = scalar_lea.vmem [#allocation2], %s260
        // Predicated region
        $region33: #{tpu_custom_call.1} parent=31 // pred_check
          %p262 = pneg %p62
        $region34: #{tpu_custom_call.1} parent=31 // pred_check_branch
          %264 = sbr.rel (%p262) target = $region36
        $region35: #{tpu_custom_call.1} parent=31 // pred_region
          %265 = dma.done %s258, 64
        $region36: #{tpu_custom_call.1} parent=31 // pred_fallthru
          _
        // Predicated region
        $region37: #{tpu_custom_call.1} parent=31 // pred_check
          %p266 = pneg %p83
        $region38: #{tpu_custom_call.1} parent=31 // pred_check_branch
          %268 = sbr.rel (%p266) target = $region40
        $region39: #{tpu_custom_call.1} parent=31 // pred_region
          %269 = dma.done [#allocation6], 256
        $region40: #{tpu_custom_call.1} parent=31 // pred_fallthru
          _
        // Predicated region
        $region41: #{tpu_custom_call.1} parent=31 // pred_check
          %p270 = pneg %p104
        $region42: #{tpu_custom_call.1} parent=31 // pred_check_branch
          %272 = sbr.rel (%p270) target = $region44
        $region43: #{tpu_custom_call.1} parent=31 // pred_region
          %273 = dma.done [#allocation6], 16
        $region44: #{tpu_custom_call.1} parent=31 // pred_fallthru
          _
        %s274 = sand.u32 %s49, 1
        %s275 = scalar_lea.sflag [#allocation3], %s274
        %s276 = sand.u32 %s49, 1
        %s277 = smul.addr %s276, 4
        %s278 = scalar_lea.vmem [#allocation2], %s277
        %p279 = pneg %p62
        %p280 = pneg %p59
        %p281 = pneg %p83
        %p282 = pneg %p80
        %p283 = pneg %p104
        %p284 = pneg %p101
        %p285 = pneg %p132
        %p286 = pneg %p129
        %s287 = sand.u32 %s119, 1
        %s288 = scalar_lea.sflag [#allocation4], %s287
        %s289 = sand.u32 %s119, 1
        %s290 = smul.addr %s289, 4
        %s291 = scalar_lea.vmem [#allocation8], %s290
        %p292 = pneg %p160
        %p293 = pneg %p157
        %s294 = sand.u32 %s27, 1
        %s295 = scalar_lea.sflag [#allocation10], %s294
        %s296 = sand.u32 %s147, 1
        %s297 = smul.addr %s296, 4
        %s298 = scalar_lea.vmem [#allocation9], %s297
        %p299 = pneg %p188
        %p300 = pneg %p185
        %s301 = sand.u32 %s27, 1
        %s302 = scalar_lea.sflag [#allocation10], %s301
        %s303 = sand.u32 %s175, 1
        %s304 = smul.addr %s303, 4
        %s305 = scalar_lea.vmem [#allocation11], %s304
        %v307 = vld [vmem:[%s261] sm:$0xf]
        %v308 = vld [vmem:[#allocation5] sm:$0xf]
        %v309 = vld [vmem:[#allocation5 + $0x4] sm:$0xf]
        %v310 = vld [vmem:[#allocation5 + $0x8] sm:$0xf]
        %v311 = vld [vmem:[#allocation5 + $0xc] sm:$0xf]
        %v312 = vld [vmem:[#allocation7] sm:$0x1]
        %v314 = vlaneseq
        %v315 = vshrl.u32 %v314, 7
        %v316 = vsub.s32 0, %v315
        %v317 = vrot.slane %v312, %v316
        %v323 = vunpack.c.l.b16 %v308
        %v324 = vunpack.c.l.b16 %v309
        %v325 = vunpack.c.l.b16 %v310
        %v326 = vunpack.c.l.b16 %v311
        %v327 = vpack.c.b16 %v324, %v323
        %v328 = vpack.c.b16 %v326, %v325
        %vm331 = vcmask 261120
        %v333 = vsel %vm331, %v307, 0
        %335 = vmatprep.subr.bf16.mxu0 0
        %336 = vmatpush1.bf16.msra.mxu0 %v327
        %337 = vmatprep.subr.bf16.mxu0 0
        %338 = vmatpush1.bf16.msra.mxu0 %v328
        %339 = vmatprep.subr.bf16.mxu0 0
        %340 = vmatpush1.bf16.msra.mxu0 0
        %341 = vmatprep.subr.bf16.mxu0 0
        %342 = vmatpush1.bf16.msra.mxu0 0
        %343 = vmatprep.subr.bf16.mxu0 0
        %344 = vmatpush1.bf16.msra.mxu0 0
        %345 = vmatprep.subr.bf16.mxu0 0
        %346 = vmatpush1.bf16.msra.mxu0 0
        %347 = vmatprep.subr.bf16.mxu0 0
        %348 = vmatpush1.bf16.msra.mxu0 0
        %349 = vmatprep.subr.bf16.mxu0 0
        %350 = vmatpush1.bf16.msra.mxu0 0
        %351 = vmatprep.subr.bf16.mxu0 0
        %352 = vmatpush1.bf16.msra.mxu0 0
        %353 = vmatprep.subr.bf16.mxu0 0
        %354 = vmatpush1.bf16.msra.mxu0 0
        %355 = vmatprep.subr.bf16.mxu0 0
        %356 = vmatpush1.bf16.msra.mxu0 0
        %357 = vmatprep.subr.bf16.mxu0 0
        %358 = vmatpush1.bf16.msra.mxu0 0
        %359 = vmatprep.subr.bf16.mxu0 0
        %360 = vmatpush1.bf16.msra.mxu0 0
        %361 = vmatprep.subr.bf16.mxu0 0
        %362 = vmatpush1.bf16.msra.mxu0 0
        %363 = vmatprep.subr.bf16.mxu0 0
        %364 = vmatpush1.bf16.msra.mxu0 0
        %365 = vmatprep.subr.bf16.mxu0 0
        %366 = vmatpush1.bf16.msra.mxu0 0
        %367 = vmatprep.mubr.bf16.mxu0 0
        %368 = vmatmul.mubr.bf16.gmra.mrb[0].mxu0 %v333
        %v369 = vpop.f32.mrb[0].mxu0
        %v370 = vadd.f32 %v317, %v369
        %v371 = vpop.f32.mrb[0].mxu0
        %v372 = vpop.f32.mrb[0].mxu0
        %v373 = vpop.f32.mrb[0].mxu0
        %374 = vdwg.mxu0
        %v375 = vmul.f32 %v370, 0.35355338
        %v376 = vpack.c.bf16 %v375, %v375
        %vm377 = vcmask 257024
        %378 = vst.msk [vmem:[%s291] sm:$0xf] %vm377, %v376
        %v379 = vpack.c.bf16 %v370, %v370
        %v381 = vunpack.c.l.b16 %v379
        %v382 = vpack.c.b16 %v381, %v381
        %383 = vrot.lane.b32.xlu0 %v382, 96
        %v384 = vpop.permute.xlu0 %383
        %386 = vst.msk [vmem:[%s298] sm:$0xf] %vm377, %v384
        %387 = vrot.lane.b32.xlu0 %v382, 64
        %v388 = vpop.permute.xlu0 %387
        %390 = vst.msk [vmem:[%s305] sm:$0xf] %vm377, %v388
        %s391 = sand.u32 %s119, 1
        %s392 = scalar_lea.sflag [#allocation4], %s391
        %s393 = sand.u32 %s119, 1
        %s394 = smul.addr %s393, 4
        %s395 = scalar_lea.vmem [#allocation8], %s394
        %s396 = sand.u32 %s27, 1
        %s397 = scalar_lea.sflag [#allocation10], %s396
        %s398 = sand.u32 %s147, 1
        %s399 = smul.addr %s398, 4
        %s400 = scalar_lea.vmem [#allocation9], %s399
        %s401 = sand.u32 %s27, 1
        %s402 = scalar_lea.sflag [#allocation10], %s401
        %s403 = sand.u32 %s175, 1
        %s404 = smul.addr %s403, 4
        %s405 = scalar_lea.vmem [#allocation11], %s404
        // Predicated region
        $region45: #{tpu_custom_call.1} parent=31 // pred_check
          %p406 = pneg %p129
        $region46: #{tpu_custom_call.1} parent=31 // pred_check_branch
          %408 = sbr.rel (%p406) target = $region48
        $region47: #{tpu_custom_call.1} parent=31 // pred_region
          %s410 = ssub.s32 64, 64
          %411 = vsyncadd %s392, %s410
          %s412 = sadd.s32 %s32, %s31
          %s413 = smul.addr %s412, 64
          %s414 = scalar_lea.hbm %s3, %s413
          %s416 = sshll.u32 %s395, 4
          %s417 = int_to_ptr.vmem [resolvable:$true] %s416
          %419 = dma.vmem_to_hbm [thread:$0]  %s417, 64, %s414, %s392
        $region48: #{tpu_custom_call.1} parent=31 // pred_fallthru
          _
        // Predicated region
        $region49: #{tpu_custom_call.1} parent=31 // pred_check
          %p420 = pneg %p157
        $region50: #{tpu_custom_call.1} parent=31 // pred_check_branch
          %422 = sbr.rel (%p420) target = $region52
        $region51: #{tpu_custom_call.1} parent=31 // pred_region
          %s424 = ssub.s32 64, 64
          %425 = vsyncadd %s397, %s424
          %s426 = sadd.s32 %s32, %s31
          %s427 = smul.addr %s426, 64
          %s428 = scalar_lea.hbm %s4, %s427
          %s430 = sshll.u32 %s400, 4
          %s431 = int_to_ptr.vmem [resolvable:$true] %s430
          %433 = dma.vmem_to_hbm [thread:$0]  %s431, 64, %s428, %s397
        $region52: #{tpu_custom_call.1} parent=31 // pred_fallthru
          _
        // Predicated region
        $region53: #{tpu_custom_call.1} parent=31 // pred_check
          %p434 = pneg %p185
        $region54: #{tpu_custom_call.1} parent=31 // pred_check_branch
          %436 = sbr.rel (%p434) target = $region56
        $region55: #{tpu_custom_call.1} parent=31 // pred_region
          %s438 = ssub.s32 64, 64
          %439 = vsyncadd %s402, %s438
          %s440 = sadd.s32 %s32, %s31
          %s441 = smul.addr %s440, 64
          %s442 = scalar_lea.hbm %s5, %s441
          %s444 = sshll.u32 %s405, 4
          %s445 = int_to_ptr.vmem [resolvable:$true] %s444
          %447 = dma.vmem_to_hbm [thread:$0]  %s445, 64, %s442, %s402
        $region56: #{tpu_custom_call.1} parent=31 // pred_fallthru
          _
      $region32: #{tpu_custom_call.1} parent=5 // pred_fallthru
        _
      %p448 = scmp.le.s32.totalorder 2, %s22
      // Predicated region
      $region57: #{tpu_custom_call.1} parent=5 // pred_check
        %p449 = pneg %p448
      $region58: #{tpu_custom_call.1} parent=5 // pred_check_branch
        %451 = sbr.rel (%p449) target = $region60
      $region59: #{tpu_custom_call.1} parent=5 // pred_region
        %s452 = ssub.s32 %s22, 2
        // Predicated region
        $region61: #{tpu_custom_call.1} parent=59 // pred_check
          %p453 = pneg %p135
        $region62: #{tpu_custom_call.1} parent=59 // pred_check_branch
          %455 = sbr.rel (%p453) target = $region64
        $region63: #{tpu_custom_call.1} parent=59 // pred_region
          %s456 = sand.u32 %s120, 1
          %s457 = scalar_lea.sflag [#allocation4], %s456
          %s458 = sand.u32 %s120, 1
          %s459 = smul.addr %s458, 4
          %s460 = scalar_lea.vmem [#allocation8], %s459
          %461 = dma.done %s457, 64
        $region64: #{tpu_custom_call.1} parent=59 // pred_fallthru
          _
        // Predicated region
        $region65: #{tpu_custom_call.1} parent=59 // pred_check
          %p462 = pneg %p163
        $region66: #{tpu_custom_call.1} parent=59 // pred_check_branch
          %464 = sbr.rel (%p462) target = $region68
        $region67: #{tpu_custom_call.1} parent=59 // pred_region
          %s465 = sand.u32 %s28, 1
          %s466 = scalar_lea.sflag [#allocation10], %s465
          %s467 = sand.u32 %s148, 1
          %s468 = smul.addr %s467, 4
          %s469 = scalar_lea.vmem [#allocation9], %s468
          %470 = dma.done %s466, 64
        $region68: #{tpu_custom_call.1} parent=59 // pred_fallthru
          _
        // Predicated region
        $region69: #{tpu_custom_call.1} parent=59 // pred_check
          %p471 = pneg %p191
        $region70: #{tpu_custom_call.1} parent=59 // pred_check_branch
          %473 = sbr.rel (%p471) target = $region72
        $region71: #{tpu_custom_call.1} parent=59 // pred_region
          %s474 = sand.u32 %s28, 1
          %s475 = scalar_lea.sflag [#allocation10], %s474
          %s476 = sand.u32 %s176, 1
          %s477 = smul.addr %s476, 4
          %s478 = scalar_lea.vmem [#allocation11], %s477
          %479 = dma.done %s475, 64
        $region72: #{tpu_custom_call.1} parent=59 // pred_fallthru
          _
      $region60: #{tpu_custom_call.1} parent=5 // pred_fallthru
        _
    $region6: #{tpu_custom_call.1} parent=1 // loop_footer
      %s26 = sadd.s32 1, %s22
    $region7: #{tpu_custom_call.1} parent=1 // loop_footer_branch
      %21 = sbr.rel target = $region3
    $region8: #{tpu_custom_call.1} parent=1 // loop_exit
      _
    %480 = vsyncpa [#allocation3], 1
    %s481 = scalar_lea.sflag [#allocation3], 1
    %482 = vsyncpa %s481, 1
    %483 = vsyncpa [#allocation6], 1
    %484 = vsyncpa [#allocation4], 1
    %s485 = scalar_lea.sflag [#allocation4], 1
    %486 = vsyncpa %s485, 1
    %487 = vsyncpa [#allocation10], 1
    %s488 = scalar_lea.sflag [#allocation10], 1
    %489 = vsyncpa %s488, 1

</llo_original>
